<compile_context>
chip_gen: v7x
topology: tpu7x:2x2x1
jax: 0.10.0
libtpu: 0.0.40
codegen_flags: <defaults>
</compile_context>

<pallas_src>
import functools
import math

import jax
import jax.numpy as jnp
from jax import lax
from jax.experimental import pallas as pl
from jax.experimental.pallas import tpu as pltpu

MARGIN = 0.1  # nn.MarginRankingLoss(margin=0.1), reduction='mean'


def _diag_kernel(v_ref, t_ref, d_ref):
    """Pass 1: d[i] = <v_i, t_i> read straight off the MXU (per row tile)."""
    tm = v_ref.shape[0]
    p = lax.dot_general(v_ref[...], t_ref[...],
                        dimension_numbers=(((1,), (1,)), ((), ())),
                        preferred_element_type=jnp.float32)         # [tm, tm]
    rows = lax.broadcasted_iota(jnp.int32, (tm, tm), 0)
    cols = lax.broadcasted_iota(jnp.int32, (tm, tm), 1)
    d_ref[...] = jnp.sum(jnp.where(rows == cols, p, 0.0),
                         axis=1, keepdims=True)                      # [tm, 1]


def _ranking_kernel(v_ref, t_ref, drow_ref, dcol_ref,
                    vt_ref, tv_ref, rank_ref, *, margin, tm, tn):
    """Pass 2: one row tile x one column block of s per grid step."""
    i = pl.program_id(0)   # row-tile index   ("parallel"   -> megacore on v7x)
    k = pl.program_id(1)   # column block idx ("arbitrary"  -> accumulated)

    @pl.when(k == 0)
    def _init():
        vt_ref[...] = jnp.zeros_like(vt_ref)
        tv_ref[...] = jnp.zeros_like(tv_ref)
        rank_ref[...] = jnp.zeros_like(rank_ref)

    # Single MXU matmul: s[r, c] = <v[i0+r], t[j0+c]>; D is contracted directly
    # on the natural [*, D] layouts (no wrapper transpose, rhs stationary).
    s = lax.dot_general(v_ref[...], t_ref[...],
                        dimension_numbers=(((1,), (1,)), ((), ())),
                        preferred_element_type=jnp.float32)          # [tm, tn]

    d_row = s - drow_ref[...]    # s[i, j] - s[i, i]   (v->t direction + rank)
    d_col = s - dcol_ref[...]    # s[i, j] - s[j, j]   (t->v direction)

    hinge_row = jnp.maximum(d_row + margin, 0.0)
    hinge_col = jnp.maximum(d_col + margin, 0.0)
    gt = (d_row > 0.0).astype(jnp.float32)

    # Lane-axis (axis=1) reductions first, accumulate into [tm, 1] outputs.
    vt_ref[...] += jnp.sum(hinge_row, axis=1, keepdims=True)
    tv_ref[...] += jnp.sum(hinge_col, axis=1, keepdims=True)
    rank_ref[...] += jnp.sum(gt, axis=1, keepdims=True)

    # The j == i (diagonal) pairs of this row tile live entirely inside column
    # block k_diag (wrapper enforces tn % tm == 0).  Subtract their
    # contributions exactly, once; all other blocks need no masking at all.
    k_diag = (i * tm) // tn

    @pl.when(k == k_diag)
    def _remove_diag():
        i0 = i * tm
        j0 = k * tn
        rows = lax.broadcasted_iota(jnp.int32, (tm, tn), 0)
        cols = lax.broadcasted_iota(jnp.int32, (tm, tn), 1)
        on_diag = (cols - rows) == (i0 - j0)
        # On the diagonal d_row == d_col (same diag_all entry), so a single
        # correction serves both hinge sums.
        diag_hinge = jnp.sum(jnp.where(on_diag, hinge_row, 0.0),
                             axis=1, keepdims=True)
        vt_ref[...] -= diag_hinge
        tv_ref[...] -= diag_hinge
        rank_ref[...] -= jnp.sum(jnp.where(on_diag, gt, 0.0),
                                 axis=1, keepdims=True)


def _pick_tile(n, candidates):
    for t in candidates:
        if n % t == 0:
            return t
    return n  # fallback: single block along this axis


def ranking_head(v_feat, t_feat, margin=MARGIN, row_tile=None, col_tile=None,
                 compute_dtype=None):
    """v_feat: [N, D], t_feat: [N, D] (text_num_per_video T == 1)."""
    N, D = v_feat.shape
    assert t_feat.shape == (N, D), "T (text_num_per_video) must be 1"
    assert N >= 2, "need at least 2 samples for N*(N-1) ranking pairs"

    if compute_dtype is not None:   # e.g. jnp.bfloat16 for ~3x MXU throughput
        v_feat = v_feat.astype(compute_dtype)
        t_feat = t_feat.astype(compute_dtype)

    # Row tile sized for a 256-wide MXU; column tile keeps the [tm, tn] f32
    # epilogue working set around ~1 MiB.
    tm = row_tile if row_tile is not None else _pick_tile(N, (256, 128, 64, 32, 16, 8))
    tn = col_tile if col_tile is not None else _pick_tile(N, (512, 256, 128))
    assert N % tm == 0 and N % tn == 0, "tiles must divide N"
    if tn % tm != 0:  # a row tile's diagonal must sit inside one column block
        tm = math.gcd(tm, tn)
    assert tn % tm == 0
    # Mosaic block-shape constraint: last two dims of every block must be
    # divisible by (8, 128) or equal the full array dims.
    assert tm % 8 == 0 or tm == N, "row_tile must be a multiple of 8 (or == N)"
    assert tn % 128 == 0 or tn == N, "col_tile must be a multiple of 128 (or == N)"

    isz = jnp.dtype(v_feat.dtype).itemsize

    # ---- pass 1: exact diagonal s[i, i] from the MXU (tiny: N*tm*D MACs). ----
    diag = pl.pallas_call(
        _diag_kernel,
        grid=(N // tm,),
        in_specs=[pl.BlockSpec((tm, D), lambda i: (i, 0)),
                  pl.BlockSpec((tm, D), lambda i: (i, 0))],
        out_specs=pl.BlockSpec((tm, 1), lambda i: (i, 0)),
        out_shape=jax.ShapeDtypeStruct((N, 1), jnp.float32),
        compiler_params=pltpu.CompilerParams(
            dimension_semantics=("parallel",)),
        cost_estimate=pl.CostEstimate(flops=2 * N * tm * D, transcendentals=0,
                                      bytes_accessed=2 * N * D * isz + N * 4),
    )(v_feat, t_feat)

    diag_row = diag                  # [N, 1]  row-direction view
    diag_col = diag.reshape(1, N)    # [1, N]  column-direction view

    # ---- pass 2: row-tiled x column-tiled hinge / rank reduction. ----
    grid = (N // tm, N // tn)
    kernel = functools.partial(_ranking_kernel, margin=float(margin), tm=tm, tn=tn)

    vmem_need = (4 * (tm + tn) * D * isz   # double-buffered v / t tiles
                 + 8 * tm * tn * 4         # f32 block intermediates / spill slack
                 + 4 * (tm + tn) * 4       # diag slices
                 + 12 * tm * 4             # per-row accumulators
                 + (2 << 20))
    vmem_limit = int(min(max(vmem_need, 32 << 20), 48 << 20))  # <=48 MiB for v7x

    out_shape = jax.ShapeDtypeStruct((N, 1), jnp.float32)
    vt_rows, tv_rows, rank_rows = pl.pallas_call(
        kernel,
        grid=grid,
        in_specs=[
            pl.BlockSpec((tm, D), lambda i, k: (i, 0)),   # v row tile (held across k)
            pl.BlockSpec((tn, D), lambda i, k: (k, 0)),   # t column block (streamed)
            pl.BlockSpec((tm, 1), lambda i, k: (i, 0)),   # diag for this row tile
            pl.BlockSpec((1, tn), lambda i, k: (0, k)),   # diag for this column block
        ],
        out_specs=[pl.BlockSpec((tm, 1), lambda i, k: (i, 0))] * 3,
        out_shape=[out_shape] * 3,
        compiler_params=pltpu.CompilerParams(
            dimension_semantics=("parallel", "arbitrary"),
            vmem_limit_bytes=vmem_limit),
        cost_estimate=pl.CostEstimate(
            flops=2 * N * N * D, transcendentals=0,
            bytes_accessed=(N * D * isz                  # v read once
                            + (N // tm) * N * D * isz    # t streamed per row tile
                            + 2 * N * 4 + 3 * N * 4)),
    )(v_feat, t_feat, diag_row, diag_col)

    # ---- tiny final reduction / normalization in plain JAX. ----
    n_pairs = N * (N - 1)
    losses = {
        'v_t_ranking_loss': jnp.sum(vt_rows) / n_pairs,
        't_v_ranking_loss': jnp.sum(tv_rows) / n_pairs,
    }
    rank = rank_rows[:, 0]
    # TODO(synk): torch.sort index-order tie-breaking is not reproduced; rank
    # assumes no exact score ties (fine for continuous features).
    metric = {
        'recall1': jnp.mean((rank < 1.0).astype(jnp.float32)),
        'recall5': jnp.mean((rank < 5.0).astype(jnp.float32)),
        'recall10': jnp.mean((rank < 10.0).astype(jnp.float32)),
        'mean_rk': jnp.mean(rank),
    }
    return losses, metric


def _reference(v, t, margin=MARGIN):
    """Pure-JAX reference of the module semantics."""
    N = v.shape[0]
    s = jnp.matmul(v, t.T, preferred_element_type=jnp.float32)
    diag = jnp.diag(s)
    mask = ~jnp.eye(N, dtype=bool)
    n_pairs = N * (N - 1)
    vt = jnp.sum(jnp.where(mask, jnp.maximum(s - diag[:, None] + margin, 0.0), 0.0)) / n_pairs
    tv = jnp.sum(jnp.where(mask, jnp.maximum(s - diag[None, :] + margin, 0.0), 0.0)) / n_pairs
    rank = jnp.sum((s > diag[:, None]).astype(jnp.float32), axis=1)
    return {
        'v_t_ranking_loss': vt,
        't_v_ranking_loss': tv,
        'recall1': jnp.mean((rank < 1).astype(jnp.float32)),
        'recall5': jnp.mean((rank < 5).astype(jnp.float32)),
        'recall10': jnp.mean((rank < 10).astype(jnp.float32)),
        'mean_rk': jnp.mean(rank),
    }


def _check(got, ref, atol, rtol):
    for k, rv in ref.items():
        rv = float(rv)
        gv = float(got[k])
        assert abs(gv - rv) <= atol + rtol * abs(rv), (k, gv, rv)


if __name__ == "__main__":
    key = jax.random.PRNGKey(0)
    kv, kt = jax.random.split(key)
    D = 256  # features are 256-d per the module docstring

    # Case 1: tiny batch, single tile (grid (1, 1)).
    N1 = 16
    v1 = jax.random.normal(kv, (N1, D), dtype=jnp.float32)
    t1 = jax.random.normal(kt, (N1, D), dtype=jnp.float32)
    losses1, metric1 = ranking_head(v1, t1)
    jax.block_until_ready((losses1, metric1))
    _check({**losses1, **metric1}, _reference(v1, t1), atol=5e-3, rtol=1e-3)

    # Case 2: multi-tile grid (2 row tiles x 2 column blocks) exercising the
    # cross-block accumulation, the "parallel" row axis and the diagonal
    # correction landing in a non-first column block.
    N2 = 256
    kv2, kt2 = jax.random.split(jax.random.PRNGKey(1))
    v2 = jax.random.normal(kv2, (N2, D), dtype=jnp.float32)
    t2 = jax.random.normal(kt2, (N2, D), dtype=jnp.float32)
    losses2, metric2 = ranking_head(v2, t2, row_tile=128, col_tile=128)
    jax.block_until_ready((losses2, metric2))
    _check({**losses2, **metric2}, _reference(v2, t2), atol=5e-3, rtol=1e-3)

    # Case 3: bf16 operand fast path (~3x MXU throughput, half the VMEM),
    # checked against a bf16-input reference with a loose tolerance.
    losses3, metric3 = ranking_head(v2, t2, row_tile=128, col_tile=128,
                                    compute_dtype=jnp.bfloat16)
    jax.block_until_ready((losses3, metric3))
    ref3 = _reference(v2.astype(jnp.bfloat16), t2.astype(jnp.bfloat16))
    _check({**losses3, **metric3}, ref3, atol=2e-2, rtol=1e-2)

    print("KERNEL_OK")
</pallas_src>

<mosaic_0001>
module attributes {stable_mosaic.version = 11 : i64} {
  func.func @_diag_kernel(%arg0: i32, %arg1: memref<16x256xf32, #tpu.memory_space<vmem>>, %arg2: memref<16x256xf32, #tpu.memory_space<vmem>>, %arg3: memref<16x1xf32, #tpu.memory_space<vmem>>) attributes {dimension_semantics = [#tpu.dimension_semantics<parallel>], iteration_bounds = array<i64: 1>, scalar_prefetch = 0 : i64, scratch_operands = 0 : i64, tpu.core_type = #tpu.core_type<tc>, window_params = [{transform_indices = @transform_0, window_bounds = array<i64: 16, 256>}, {transform_indices = @transform_1, window_bounds = array<i64: 16, 256>}, {transform_indices = @transform_2, window_bounds = array<i64: 16, 1>}]} {
    %c0 = arith.constant 0 : index
    %c0_0 = arith.constant 0 : index
    %0 = vector.load %arg1[%c0, %c0_0] : memref<16x256xf32, #tpu.memory_space<vmem>>, vector<16x256xf32>
    %c0_1 = arith.constant 0 : index
    %c0_2 = arith.constant 0 : index
    %1 = vector.load %arg2[%c0_1, %c0_2] : memref<16x256xf32, #tpu.memory_space<vmem>>, vector<16x256xf32>
    %cst = arith.constant dense<0.000000e+00> : vector<16x16xf32>
    %2 = tpu.matmul %0, %1, %cst {dimension_numbers = #tpu.dot_dimension_numbers<[1], [1], [0], [0], [0, 0, 1, 0], [], []>} : vector<16x256xf32>, vector<16x256xf32>, vector<16x16xf32> -> vector<16x16xf32>
    %3 = tpu.iota {dimensions = array<i32: 0>} : vector<16x16xi32>
    %4 = tpu.iota {dimensions = array<i32: 1>} : vector<16x16xi32>
    %5 = arith.cmpi eq, %3, %4 : vector<16x16xi32>
    %cst_3 = arith.constant 0.000000e+00 : f32
    %6 = vector.broadcast %cst_3 : f32 to vector<16x16xf32>
    %7 = arith.select %5, %2, %6 : vector<16x16xi1>, vector<16x16xf32>
    %cst_4 = arith.constant dense<0.000000e+00> : vector<16xf32>
    %8 = vector.multi_reduction <add>, %7, %cst_4 [1] : vector<16x16xf32> to vector<16xf32>
    %9 = vector.shape_cast %8 : vector<16xf32> to vector<16x1xf32>
    %c0_5 = arith.constant 0 : index
    %c0_6 = arith.constant 0 : index
    %10 = vector.load %arg3[%c0_5, %c0_6] : memref<16x1xf32, #tpu.memory_space<vmem>>, vector<16x1xf32>
    tpu.vector_store %arg3[%c0_5, %c0_6], %9 {strides = array<i32>} : memref<16x1xf32, #tpu.memory_space<vmem>>, vector<16x1xf32>,
    return
  }
  func.func @transform_0(%arg0: i32) -> (i32, i32) {
    %c0_i32 = arith.constant 0 : i32
    %c0_i32_0 = arith.constant 0 : i32
    return %arg0, %c0_i32 : i32, i32
  }
  func.func @transform_1(%arg0: i32) -> (i32, i32) {
    %c0_i32 = arith.constant 0 : i32
    %c0_i32_0 = arith.constant 0 : i32
    return %arg0, %c0_i32 : i32, i32
  }
  func.func @transform_2(%arg0: i32) -> (i32, i32) {
    %c0_i32 = arith.constant 0 : i32
    %c0_i32_0 = arith.constant 0 : i32
    return %arg0, %c0_i32 : i32, i32
  }
}

</mosaic_0001>

<llo_original>
// kernel: tpu_custom_call.1
$region0: #{tpu_custom_call.1}
  #allocation0 [shape = 'u32[]', space=smem, size = 0x4, offset = 0x4, fixed_abs, tag = 'smem constant byte address 0x4 - core index']
  #allocation1 [shape = 'u32[144,128]{1,0:T(1,128)}', space=vmem, size = 0x12000, scoped, tag = 'internal scratch']
  %s0 = inlined_call_operand.hbm [shape: f32[16,256], index: 0, kind: input, shape index: {}]
  %s1 = inlined_call_operand.hbm [shape: f32[16,256], index: 1, kind: input, shape index: {}]
  %s2 = inlined_call_operand.vmem [shape: f32[16,1], index: 2, kind: output, shape index: {}]
  %s3 = sld [smem:[#allocation0]]
  $region26: #{tpu_custom_call.1} parent=0
    _
  %s5 = ssub.s32 1, %s3
  %s6 = scalar_select 0, %s5, %s3
  $region1: #{tpu_custom_call.1} parent=0
    #allocation2 [shape = 'u8[16384]{0}', space=vmem, size = 0x4000, scoped, tag = 'input window, operand 0, single buffered']
    #allocation3 [shape = 's32[1]{0}', space=sflag, size = 0x4, scoped, tag = 'scoped memory for tpu_custom_call.1']
    #allocation4 [shape = 'u8[16384]{0}', space=vmem, size = 0x4000, scoped, tag = 'input window, operand 1, single buffered']
    #allocation5 [shape = 's32[1]{0}', space=sflag, size = 0x4, scoped, tag = 'scoped memory for tpu_custom_call.1']
    %7 = vsyncpa [#allocation3], 0
    %8 = vsyncpa [#allocation5], 0
    // Predicated region
    $region2: #{tpu_custom_call.1} parent=1 // pred_check
      _
    $region3: #{tpu_custom_call.1} parent=1 // pred_check_branch
      %10 = sbr.rel (0) target = $region5
    $region4: #{tpu_custom_call.1} parent=1 // pred_region
      %s12 = ssub.s32 512, 512
      %13 = vsyncadd [#allocation3], %s12
      %s14 = sshll.u32 [#allocation2], 4
      %s15 = int_to_ptr.vmem [resolvable:$true] %s14
      %20 = dma.hbm_to_vmem [thread:$0]  %s0, 512, %s15, [#allocation3], 256, 256, 16
    $region5: #{tpu_custom_call.1} parent=1 // pred_fallthru
      _
    // Predicated region
    $region6: #{tpu_custom_call.1} parent=1 // pred_check
      _
    $region7: #{tpu_custom_call.1} parent=1 // pred_check_branch
      %22 = sbr.rel (0) target = $region9
    $region8: #{tpu_custom_call.1} parent=1 // pred_region
      %s24 = ssub.s32 512, 512
      %25 = vsyncadd [#allocation5], %s24
      %s26 = sshll.u32 [#allocation4], 4
      %s27 = int_to_ptr.vmem [resolvable:$true] %s26
      %32 = dma.hbm_to_vmem [thread:$0]  %s1, 512, %s27, [#allocation5], 256, 256, 16
    $region9: #{tpu_custom_call.1} parent=1 // pred_fallthru
      _
    // Predicated region
    $region10: #{tpu_custom_call.1} parent=1 // pred_check
      _
    $region11: #{tpu_custom_call.1} parent=1 // pred_check_branch
      %34 = sbr.rel (0) target = $region13
    $region12: #{tpu_custom_call.1} parent=1 // pred_region
      %35 = dma.done [#allocation3], 512
    $region13: #{tpu_custom_call.1} parent=1 // pred_fallthru
      _
    // Predicated region
    $region14: #{tpu_custom_call.1} parent=1 // pred_check
      _
    $region15: #{tpu_custom_call.1} parent=1 // pred_check_branch
      %37 = sbr.rel (0) target = $region17
    $region16: #{tpu_custom_call.1} parent=1 // pred_region
      %38 = dma.done [#allocation5], 512
    $region17: #{tpu_custom_call.1} parent=1 // pred_fallthru
      _
    %v39 = vld [vmem:[#allocation2] sm:$0xff]
    %v40 = vld [vmem:[#allocation2 + $0x8] sm:$0xff]
    %v41 = vld [vmem:[#allocation2 + $0x10] sm:$0xff]
    %v42 = vld [vmem:[#allocation2 + $0x18] sm:$0xff]
    %v43 = vld [vmem:[#allocation4] sm:$0xff]
    %v44 = vld [vmem:[#allocation4 + $0x8] sm:$0xff]
    %v45 = vld [vmem:[#allocation4 + $0x10] sm:$0xff]
    %v46 = vld [vmem:[#allocation4 + $0x18] sm:$0xff]
    %47 = vmatprep.subr.mxu0 %v44
    %48 = vmatpush1.xpose.msra.mxu0 %v43
    %49 = vmatprep.subr.mxu0 %v46
    %50 = vmatpush1.xpose.msra.mxu0 %v45
    %51 = vmatprep.subr.mxu0 0.0
    %52 = vmatpush1.xpose.msra.mxu0 0.0
    %53 = vmatprep.subr.mxu0 0.0
    %54 = vmatpush1.xpose.msra.mxu0 0.0
    %55 = vmatprep.subr.mxu0 0.0
    %56 = vmatpush1.xpose.msra.mxu0 0.0
    %57 = vmatprep.subr.mxu0 0.0
    %58 = vmatpush1.xpose.msra.mxu0 0.0
    %59 = vmatprep.subr.mxu0 0.0
    %60 = vmatpush1.xpose.msra.mxu0 0.0
    %61 = vmatprep.subr.mxu0 0.0
    %62 = vmatpush1.xpose.msra.mxu0 0.0
    %63 = vmatprep.subr.mxu0 0.0
    %64 = vmatpush1.xpose.msra.mxu0 0.0
    %65 = vmatprep.subr.mxu0 0.0
    %66 = vmatpush1.xpose.msra.mxu0 0.0
    %67 = vmatprep.subr.mxu0 0.0
    %68 = vmatpush1.xpose.msra.mxu0 0.0
    %69 = vmatprep.subr.mxu0 0.0
    %70 = vmatpush1.xpose.msra.mxu0 0.0
    %71 = vmatprep.subr.mxu0 0.0
    %72 = vmatpush1.xpose.msra.mxu0 0.0
    %73 = vmatprep.subr.mxu0 0.0
    %74 = vmatpush1.xpose.msra.mxu0 0.0
    %75 = vmatprep.subr.mxu0 0.0
    %76 = vmatpush1.xpose.msra.mxu0 0.0
    %77 = vmatprep.subr.mxu0 0.0
    %78 = vmatpush1.xpose.msra.mxu0 0.0
    %79 = vmatprep.subr.mxu0 0.0
    %80 = vmatpush1.xpose.msra.mxu0 0.0
    %81 = vmatprep.subr.mxu0 0.0
    %82 = vmatpush1.xpose.msra.mxu0 0.0
    %83 = vmatprep.subr.mxu0 0.0
    %84 = vmatpush1.xpose.msra.mxu0 0.0
    %85 = vmatprep.subr.mxu0 0.0
    %86 = vmatpush1.xpose.msra.mxu0 0.0
    %87 = vmatprep.subr.mxu0 0.0
    %88 = vmatpush1.xpose.msra.mxu0 0.0
    %89 = vmatprep.subr.mxu0 0.0
    %90 = vmatpush1.xpose.msra.mxu0 0.0
    %91 = vmatprep.subr.mxu0 0.0
    %92 = vmatpush1.xpose.msra.mxu0 0.0
    %93 = vmatprep.subr.mxu0 0.0
    %94 = vmatpush1.xpose.msra.mxu0 0.0
    %95 = vmatprep.subr.mxu0 0.0
    %96 = vmatpush1.xpose.msra.mxu0 0.0
    %97 = vmatprep.subr.mxu0 0.0
    %98 = vmatpush1.xpose.msra.mxu0 0.0
    %99 = vmatprep.subr.mxu0 0.0
    %100 = vmatpush1.xpose.msra.mxu0 0.0
    %101 = vmatprep.subr.mxu0 0.0
    %102 = vmatpush1.xpose.msra.mxu0 0.0
    %103 = vmatprep.subr.mxu0 0.0
    %104 = vmatpush1.xpose.msra.mxu0 0.0
    %105 = vmatprep.subr.mxu0 0.0
    %106 = vmatpush1.xpose.msra.mxu0 0.0
    %107 = vmatprep.subr.mxu0 0.0
    %108 = vmatpush1.xpose.msra.mxu0 0.0
    %109 = vmatprep.subr.mxu0 0.0
    %110 = vmatpush1.xpose.msra.mxu0 0.0
    %111 = vmatprep.mubr.f32.mxu0 %v40
    %112 = vmatmul.mubr.f32.gmra.mrb[0].mxu0 %v39
    %v113 = vpop.f32.mrb[0].mxu0
    %v114 = vadd.f32 0.0, %v113
    %v115 = vpop.f32.mrb[0].mxu0
    %116 = vmatprep.mubr.f32.mxu0 %v42
    %117 = vmatmul.mubr.f32.gmra.mrb[0].mxu0 %v41
    %v118 = vpop.f32.mrb[0].mxu0
    %v119 = vadd.f32 0.0, %v118
    %v120 = vpop.f32.mrb[0].mxu0
    %121 = vdwg.mxu0
    %v122 = vlaneseq
    %v123 = vshrl.u32 %v122, 7
    %v124 = vadd.s32 %v123, 8
    %v125 = vlaneseq
    %v126 = vand.u32 %v125, 127
    %vm127 = vcmp.eq.s32.totalorder %v123, %v126
    %vm128 = vcmp.eq.s32.totalorder %v124, %v126
    %v129 = vsel %vm127, %v114, 0.0
    %v130 = vsel %vm128, %v119, 0.0
    %vm131 = vcmask 130048
    %v132 = vsel %vm131, %v129, 0.0
    %133 = vadd.xlane.f32.xlu0 %v132
    %v134 = vpop.xlane.xlu0 %133
    %v135 = vsel %vm131, %v130, 0.0
    %136 = vadd.xlane.f32.xlu0 %v135
    %v137 = vpop.xlane.xlu0 %136
    %vm138 = vcmask 7168
    %139 = vst.msk [vmem:[%s2] sm:$0xff] %vm138, %v134
    %140 = vst.msk [vmem:[%s2 + $0x8] sm:$0xff] %vm138, %v137
    // Predicated region
    $region18: #{tpu_custom_call.1} parent=1 // pred_check
      _
    $region19: #{tpu_custom_call.1} parent=1 // pred_check_branch
      %142 = sbr.rel (0) target = $region21
    $region20: #{tpu_custom_call.1} parent=1 // pred_region
      _
    $region21: #{tpu_custom_call.1} parent=1 // pred_fallthru
      _
    // Predicated region
    $region22: #{tpu_custom_call.1} parent=1 // pred_check
      _
    $region23: #{tpu_custom_call.1} parent=1 // pred_check_branch
      %144 = sbr.rel (0) target = $region25
    $region24: #{tpu_custom_call.1} parent=1 // pred_region
      _
    $region25: #{tpu_custom_call.1} parent=1 // pred_fallthru
      _
    %145 = vsyncpa [#allocation3], 1
    %146 = vsyncpa [#allocation5], 1

</llo_original>
